<compile_context>
chip_gen: v5e
topology: v5e:2x2
jax: 0.10.0
libtpu: 0.0.40
codegen_flags: <defaults>
</compile_context>

<pallas_src>
import functools

import jax
import jax.numpy as jnp
from jax.experimental import pallas as pl
from jax.experimental.pallas import tpu as pltpu


def _round_up(n, m):
    return ((n + m - 1) // m) * m


def _vmem_budget_bytes():
    """Per-generation VMEM budget with headroom for compiler internal scratch."""
    try:
        cap = pltpu.get_tpu_info().vmem_capacity_bytes  # 128 MiB v5e/v6e, 64 MiB v7x
    except Exception:
        cap = 64 << 20
    return int(cap * 0.6)


def _pick_time_block(T, tt_cap):
    """Pick timesteps-per-grid-step; prefer a divisor of T (no masked tail)."""
    tt_cap = max(1, min(tt_cap, T, 128))
    for cand in range(tt_cap, 0, -1):        # largest divisor of T <= tt_cap
        if T % cand == 0:
            if 2 * cand >= tt_cap:           # close enough to the budget-optimal size
                return cand, None            # exact -> no per-step masking
            break
    return tt_cap, T                         # fallback: padded tail, masked per step


def _lstm_kernel(xproj_ref, w_hh_ref, h_out_ref, h_scr, c_scr, *,
                 tt, h_pad, n_chains, b_chain, t_total, unroll):
    """One (batch-block, time-chunk) grid step of the LSTM recurrence.

    xproj_ref : (TT, B_blk, 4*H_pad) bf16  precomputed x_t @ W_ih^T + b, gates [i,f,o,g]
    w_hh_ref  : (H_pad, 4*H_pad)     bf16  recurrent weights (transposed, padded)
    h_out_ref : (B_blk, H_pad)       f32   final hidden state (written on last chunk)
    h_scr/c_scr : (B_blk, H_pad)     f32   persistent LSTM state across time chunks
    """
    tc = pl.program_id(1)

    @pl.when(tc == 0)
    def _():
        h_scr[...] = jnp.zeros_like(h_scr)
        c_scr[...] = jnp.zeros_like(c_scr)

    # Hoisted once per chunk (not re-read textually in every unrolled step).
    w_hh = w_hh_ref[...]

    def fast_sigmoid(x):
        # sigmoid(x) == 0.5*tanh(0.5*x) + 0.5: one EUP push + two cheap VALU ops
        # instead of exp + reciprocal (2 EUP pushes).
        return 0.5 * jnp.tanh(0.5 * x) + 0.5

    def cell(xp, h, c):
        # xp: (rows, 4*h_pad) bf16 ; h, c: (rows, h_pad) f32
        gates = xp.astype(jnp.float32) + jnp.dot(
            h.astype(jnp.bfloat16), w_hh, preferred_element_type=jnp.float32)
        sig = fast_sigmoid(gates[:, :3 * h_pad])       # [ i | f | o ] slab
        i_g = sig[:, :h_pad]
        f_g = sig[:, h_pad:2 * h_pad]
        o_g = sig[:, 2 * h_pad:]
        g_g = jnp.tanh(gates[:, 3 * h_pad:])
        c_new = f_g * c + i_g * g_g
        h_new = o_g * jnp.tanh(c_new)
        return h_new, c_new

    def step(i, carry):
        xp = xproj_ref[i]                              # (B_blk, 4*H_pad) bf16
        new = []
        for k in range(n_chains):                      # independent sub-chains
            h_k, c_k = carry[2 * k], carry[2 * k + 1]
            xp_k = xp[k * b_chain:(k + 1) * b_chain]
            h_n, c_n = cell(xp_k, h_k, c_k)
            if t_total is not None:                    # padded-time fallback only
                valid = (tc * tt + i) < t_total
                h_n = jnp.where(valid, h_n, h_k)
                c_n = jnp.where(valid, c_n, c_k)
            new += [h_n, c_n]
        return tuple(new)

    carry0 = []
    for k in range(n_chains):
        sl = slice(k * b_chain, (k + 1) * b_chain)
        carry0 += [h_scr[sl, :], c_scr[sl, :]]

    carry = jax.lax.fori_loop(0, tt, step, tuple(carry0),
                              unroll=min(unroll, tt))

    for k in range(n_chains):
        sl = slice(k * b_chain, (k + 1) * b_chain)
        h_scr[sl, :] = carry[2 * k]
        c_scr[sl, :] = carry[2 * k + 1]

    @pl.when(tc == pl.num_programs(1) - 1)
    def _():
        h_out_ref[...] = h_scr[...]


def base_rnn_forward(x, params, *, batch_block=128, unroll=8, max_time_block=None):
    """x: (B, T, D) float32, batch-first like the PyTorch module."""
    B, T, D = x.shape
    w_ih, w_hh, b_ih, b_hh, w_fc, b_fc = (
        params["w_ih"], params["w_hh"], params["b_ih"], params["b_hh"],
        params["w_fc"], params["b_fc"])
    H = w_hh.shape[1]

    H_pad = _round_up(H, 128)                 # lane-aligned gate blocks
    G = 4 * H_pad

    # ---- batch blocking (real grid axis -> 2nd TensorCore on v7x) -------------
    b_blk = min(_round_up(batch_block, 8), _round_up(B, 8))
    B_pad = _round_up(B, b_blk)
    n_bb = B_pad // b_blk
    # Two independent sub-chains per block when we have >= 2 full sublane groups.
    n_chains = 2 if (b_blk >= 16 and b_blk % 16 == 0) else 1
    b_chain = b_blk // n_chains

    # ---- weight repacking: torch [i,f,g,o] -> kernel [i,f,o,g], lane-padded ----
    order = (0, 1, 3, 2)

    def pack_cols(w):  # (4H, K) -> (K, G), reordered + zero-padded per gate
        out = jnp.zeros((w.shape[1], G), jnp.float32)
        for dst, src in enumerate(order):
            out = out.at[:, dst * H_pad:dst * H_pad + H].set(
                w[src * H:(src + 1) * H, :].T)
        return out

    w_ih_t = pack_cols(w_ih)                                          # (D, G) f32
    w_hh_t = jnp.zeros((H_pad, G), jnp.float32).at[:H].set(pack_cols(w_hh))
    b_fused = b_ih + b_hh
    b = jnp.zeros((G,), jnp.float32)
    for dst, src in enumerate(order):
        b = b.at[dst * H_pad:dst * H_pad + H].set(b_fused[src * H:(src + 1) * H])
    w_hh_bf16 = w_hh_t.astype(jnp.bfloat16)

    # ---- time-chunk size from VMEM budget --------------------------------------
    whh_bytes = H_pad * G * 2                               # bf16 (x2 double-buffered)
    fixed_bytes = 2 * whh_bytes + 3 * b_blk * H_pad * 4     # h/c scratch + out block
    per_step_bytes = 2 * b_blk * G * 2                      # double-buffered bf16 xproj/t
    budget = _vmem_budget_bytes()
    tt_cap = max(1, (budget - fixed_bytes) // per_step_bytes)
    if max_time_block is not None:
        tt_cap = min(tt_cap, max_time_block)
    TT, t_mask = _pick_time_block(T, tt_cap)
    T_pad = _round_up(T, TT)
    n_tc = T_pad // TT

    # ---- hoisted input projection (the only non-serial part), stored bf16 ------
    x_pad = jnp.zeros((B_pad, T, D), jnp.float32).at[:B].set(x.astype(jnp.float32))
    xproj = (jnp.einsum("btd,dg->tbg", x_pad, w_ih_t) + b).astype(jnp.bfloat16)
    if T_pad != T:
        xproj = jnp.pad(xproj, ((0, T_pad - T), (0, 0), (0, 0)))

    need = fixed_bytes + TT * per_step_bytes
    vmem_limit = int(min(max(2 * need, 32 << 20), 64 << 20))
    cost = pl.CostEstimate(
        flops=int(2 * T_pad * B_pad * H_pad * G + 10 * T_pad * B_pad * G),
        transcendentals=int(5 * T_pad * B_pad * H_pad),
        bytes_accessed=int(xproj.size * 2 + n_bb * n_tc * whh_bytes
                           + B_pad * H_pad * 4),
    )

    kernel = functools.partial(
        _lstm_kernel, tt=TT, h_pad=H_pad, n_chains=n_chains, b_chain=b_chain,
        t_total=t_mask, unroll=unroll)

    h_n = pl.pallas_call(
        kernel,
        out_shape=jax.ShapeDtypeStruct((B_pad, H_pad), jnp.float32),
        grid_spec=pltpu.PrefetchScalarGridSpec(
            num_scalar_prefetch=0,
            # (batch blocks, time chunks): batch blocks are embarrassingly parallel,
            # time is the serial recurrence (state in VMEM scratch across chunks).
            grid=(n_bb, n_tc),
            in_specs=[
                pl.BlockSpec((TT, b_blk, G), lambda bb, tc: (tc, bb, 0)),  # xproj chunk
                pl.BlockSpec((H_pad, G), lambda bb, tc: (0, 0)),           # W_hh^T
            ],
            out_specs=pl.BlockSpec((b_blk, H_pad), lambda bb, tc: (bb, 0)),
            scratch_shapes=[
                pltpu.VMEM((b_blk, H_pad), jnp.float32),   # h state
                pltpu.VMEM((b_blk, H_pad), jnp.float32),   # c state
            ],
        ),
        compiler_params=pltpu.CompilerParams(
            dimension_semantics=("parallel", "arbitrary"),
            vmem_limit_bytes=vmem_limit),
        cost_estimate=cost,
    )(xproj, w_hh_bf16)

    # Linear head on h_n[-1]: tiny (B, H) @ (H, O) -> leave to XLA so the kernel
    # output stays lane-dense and W_fc never occupies loop VMEM.
    return h_n[:B, :H] @ w_fc.T + b_fc


def _reference_forward(x, params):
    """Pure-JAX reference of the PyTorch forward (for the sanity check)."""
    w_ih, w_hh, b_ih, b_hh, w_fc, b_fc = (
        params["w_ih"], params["w_hh"], params["b_ih"], params["b_hh"],
        params["w_fc"], params["b_fc"])
    B, T, D = x.shape
    H = w_hh.shape[1]

    def step(carry, x_t):
        h, c = carry
        gates = x_t @ w_ih.T + b_ih + h @ w_hh.T + b_hh
        i = jax.nn.sigmoid(gates[:, 0 * H:1 * H])
        f = jax.nn.sigmoid(gates[:, 1 * H:2 * H])
        g = jnp.tanh(gates[:, 2 * H:3 * H])
        o = jax.nn.sigmoid(gates[:, 3 * H:4 * H])
        c = f * c + i * g
        h = o * jnp.tanh(c)
        return (h, c), None

    h0 = jnp.zeros((B, H), jnp.float32)
    c0 = jnp.zeros((B, H), jnp.float32)
    (h_n, _), _ = jax.lax.scan(step, (h0, c0), jnp.transpose(x, (1, 0, 2)))
    return h_n @ w_fc.T + b_fc


def init_params(key, input_dim, hidden_dim, output_dim):
    ks = jax.random.split(key, 6)
    s = 1.0 / jnp.sqrt(hidden_dim)
    return {
        "w_ih": jax.random.uniform(ks[0], (4 * hidden_dim, input_dim),
                                   jnp.float32, -s, s),
        "w_hh": jax.random.uniform(ks[1], (4 * hidden_dim, hidden_dim),
                                   jnp.float32, -s, s),
        "b_ih": jax.random.uniform(ks[2], (4 * hidden_dim,), jnp.float32, -s, s),
        "b_hh": jax.random.uniform(ks[3], (4 * hidden_dim,), jnp.float32, -s, s),
        "w_fc": jax.random.uniform(ks[4], (output_dim, hidden_dim),
                                   jnp.float32, -s, s),
        "b_fc": jax.random.uniform(ks[5], (output_dim,), jnp.float32, -s, s),
    }


if __name__ == "__main__":
    root = jax.random.PRNGKey(0)
    keys = jax.random.split(root, 3)

    def check(key, B, T, D, H, O, **kw):
        k_x, k_p = jax.random.split(key)
        x = jax.random.normal(k_x, (B, T, D), jnp.float32)
        params = init_params(k_p, D, H, O)
        out = jax.block_until_ready(base_rnn_forward(x, params, **kw))
        ref = _reference_forward(x, params)
        assert out.shape == (B, O)
        err = float(jnp.max(jnp.abs(out - ref)))
        assert jnp.allclose(out, ref, rtol=2e-2, atol=2e-2), (
            f"mismatch vs reference (max abs err {err})")

    # Primary small-shape test (module-implied shapes).
    check(keys[0], B=2, T=8, D=4, H=32, O=8)
    # Multiple batch blocks (2) x interleaved sub-chains (2 per block), TT == T.
    check(keys[1], B=32, T=12, D=8, H=64, O=16, batch_block=16)
    # Padded-time fallback path (prime T, forced small time block -> masked tail).
    check(keys[2], B=4, T=13, D=4, H=32, O=8, max_time_block=8)

    print("KERNEL_OK")
</pallas_src>

<mosaic_0001>
module attributes {stable_mosaic.version = 11 : i64} {
  func.func @_lstm_kernel(%arg0: i32, %arg1: i32, %arg2: memref<8x8x512xbf16, #tpu.memory_space<vmem>>, %arg3: memref<128x512xbf16, #tpu.memory_space<vmem>>, %arg4: memref<8x128xf32, #tpu.memory_space<vmem>>, %arg5: memref<8x128xf32, #tpu.memory_space<vmem>>, %arg6: memref<8x128xf32, #tpu.memory_space<vmem>>) attributes {dimension_semantics = [#tpu.dimension_semantics<parallel>, #tpu.dimension_semantics<arbitrary>], iteration_bounds = array<i64: 1, 1>, scalar_prefetch = 0 : i64, scratch_operands = 2 : i64, tpu.core_type = #tpu.core_type<tc>, window_params = [{transform_indices = @transform_0, window_bounds = array<i64: 8, 8, 512>}, {pipeline_mode = #tpu.pipeline_mode<synchronous>, transform_indices = @transform_1, window_bounds = array<i64: 128, 512>}, {transform_indices = @transform_2, window_bounds = array<i64: 8, 128>}]} {
    %c0_i32 = arith.constant 0 : i32
    %0 = arith.cmpi eq, %arg1, %c0_i32 : i32
    %1 = arith.extui %0 : i1 to i32
    %c0_i32_0 = arith.constant 0 : i32
    %2 = arith.cmpi ne, %1, %c0_i32_0 : i32
    scf.if %2 {
      %cst_60 = arith.constant 0.000000e+00 : f32
      %211 = vector.broadcast %cst_60 : f32 to vector<8x128xf32>
      %c0_61 = arith.constant 0 : index
      %c0_62 = arith.constant 0 : index
      %212 = vector.load %arg5[%c0_61, %c0_62] : memref<8x128xf32, #tpu.memory_space<vmem>>, vector<8x128xf32>
      tpu.vector_store %arg5[%c0_61, %c0_62], %211 {strides = array<i32>} : memref<8x128xf32, #tpu.memory_space<vmem>>, vector<8x128xf32>,
      %cst_63 = arith.constant 0.000000e+00 : f32
      %213 = vector.broadcast %cst_63 : f32 to vector<8x128xf32>
      %c0_64 = arith.constant 0 : index
      %c0_65 = arith.constant 0 : index
      %214 = vector.load %arg6[%c0_64, %c0_65] : memref<8x128xf32, #tpu.memory_space<vmem>>, vector<8x128xf32>
      tpu.vector_store %arg6[%c0_64, %c0_65], %213 {strides = array<i32>} : memref<8x128xf32, #tpu.memory_space<vmem>>, vector<8x128xf32>,
    } else {
    }
    %c0 = arith.constant 0 : index
    %c0_1 = arith.constant 0 : index
    %3 = vector.load %arg3[%c0, %c0_1] : memref<128x512xbf16, #tpu.memory_space<vmem>>, vector<128x512xbf16>
    %c0_2 = arith.constant 0 : index
    %c0_3 = arith.constant 0 : index
    %4 = vector.load %arg5[%c0_2, %c0_3] : memref<8x128xf32, #tpu.memory_space<vmem>>, vector<8x128xf32>
    %c0_4 = arith.constant 0 : index
    %c0_5 = arith.constant 0 : index
    %5 = vector.load %arg6[%c0_4, %c0_5] : memref<8x128xf32, #tpu.memory_space<vmem>>, vector<8x128xf32>
    %c0_i32_6 = arith.constant 0 : i32
    %6 = arith.index_cast %c0_i32_6 : i32 to index
    %c0_7 = arith.constant 0 : index
    %c0_8 = arith.constant 0 : index
    %7 = vector.load %arg2[%6, %c0_7, %c0_8] : memref<8x8x512xbf16, #tpu.memory_space<vmem>>, vector<1x8x512xbf16>
    %8 = vector.shape_cast %7 : vector<1x8x512xbf16> to vector<8x512xbf16>
    %9 = arith.extf %8 : vector<8x512xbf16> to vector<8x512xf32>
    %10 = arith.truncf %4 : vector<8x128xf32> to vector<8x128xbf16>
    %cst = arith.constant dense<0.000000e+00> : vector<8x512xf32>
    %11 = tpu.matmul %10, %3, %cst {dimension_numbers = #tpu.dot_dimension_numbers<[1], [0], [0], [1], [0, 0, 1, 1], [], []>} : vector<8x128xbf16>, vector<128x512xbf16>, vector<8x512xf32> -> vector<8x512xf32>
    %12 = arith.addf %9, %11 : vector<8x512xf32>
    %13 = vector.extract_strided_slice %12 {offsets = [0, 0], sizes = [8, 384], strides = [1, 1]} : vector<8x512xf32> to vector<8x384xf32>
    %cst_9 = arith.constant 5.000000e-01 : f32
    %14 = vector.broadcast %cst_9 : f32 to vector<8x384xf32>
    %15 = arith.mulf %14, %13 : vector<8x384xf32>
    %16 = math.tanh %15 : vector<8x384xf32>
    %cst_10 = arith.constant 5.000000e-01 : f32
    %17 = vector.broadcast %cst_10 : f32 to vector<8x384xf32>
    %18 = arith.mulf %17, %16 : vector<8x384xf32>
    %cst_11 = arith.constant 5.000000e-01 : f32
    %19 = vector.broadcast %cst_11 : f32 to vector<8x384xf32>
    %20 = arith.addf %18, %19 : vector<8x384xf32>
    %21 = vector.extract_strided_slice %20 {offsets = [0, 0], sizes = [8, 128], strides = [1, 1]} : vector<8x384xf32> to vector<8x128xf32>
    %22 = vector.extract_strided_slice %20 {offsets = [0, 128], sizes = [8, 128], strides = [1, 1]} : vector<8x384xf32> to vector<8x128xf32>
    %23 = vector.extract_strided_slice %20 {offsets = [0, 256], sizes = [8, 128], strides = [1, 1]} : vector<8x384xf32> to vector<8x128xf32>
    %24 = vector.extract_strided_slice %12 {offsets = [0, 384], sizes = [8, 128], strides = [1, 1]} : vector<8x512xf32> to vector<8x128xf32>
    %25 = math.tanh %24 : vector<8x128xf32>
    %26 = arith.mulf %22, %5 : vector<8x128xf32>
    %27 = arith.mulf %21, %25 : vector<8x128xf32>
    %28 = arith.addf %26, %27 : vector<8x128xf32>
    %29 = math.tanh %28 : vector<8x128xf32>
    %30 = arith.mulf %23, %29 : vector<8x128xf32>
    %c1_i32 = arith.constant 1 : i32
    %31 = arith.index_cast %c1_i32 : i32 to index
    %c0_12 = arith.constant 0 : index
    %c0_13 = arith.constant 0 : index
    %32 = vector.load %arg2[%31, %c0_12, %c0_13] : memref<8x8x512xbf16, #tpu.memory_space<vmem>>, vector<1x8x512xbf16>
    %33 = vector.shape_cast %32 : vector<1x8x512xbf16> to vector<8x512xbf16>
    %34 = arith.extf %33 : vector<8x512xbf16> to vector<8x512xf32>
    %35 = arith.truncf %30 : vector<8x128xf32> to vector<8x128xbf16>
    %cst_14 = arith.constant dense<0.000000e+00> : vector<8x512xf32>
    %36 = tpu.matmul %35, %3, %cst_14 {dimension_numbers = #tpu.dot_dimension_numbers<[1], [0], [0], [1], [0, 0, 1, 1], [], []>} : vector<8x128xbf16>, vector<128x512xbf16>, vector<8x512xf32> -> vector<8x512xf32>
    %37 = arith.addf %34, %36 : vector<8x512xf32>
    %38 = vector.extract_strided_slice %37 {offsets = [0, 0], sizes = [8, 384], strides = [1, 1]} : vector<8x512xf32> to vector<8x384xf32>
    %cst_15 = arith.constant 5.000000e-01 : f32
    %39 = vector.broadcast %cst_15 : f32 to vector<8x384xf32>
    %40 = arith.mulf %39, %38 : vector<8x384xf32>
    %41 = math.tanh %40 : vector<8x384xf32>
    %cst_16 = arith.constant 5.000000e-01 : f32
    %42 = vector.broadcast %cst_16 : f32 to vector<8x384xf32>
    %43 = arith.mulf %42, %41 : vector<8x384xf32>
    %cst_17 = arith.constant 5.000000e-01 : f32
    %44 = vector.broadcast %cst_17 : f32 to vector<8x384xf32>
    %45 = arith.addf %43, %44 : vector<8x384xf32>
    %46 = vector.extract_strided_slice %45 {offsets = [0, 0], sizes = [8, 128], strides = [1, 1]} : vector<8x384xf32> to vector<8x128xf32>
    %47 = vector.extract_strided_slice %45 {offsets = [0, 128], sizes = [8, 128], strides = [1, 1]} : vector<8x384xf32> to vector<8x128xf32>
    %48 = vector.extract_strided_slice %45 {offsets = [0, 256], sizes = [8, 128], strides = [1, 1]} : vector<8x384xf32> to vector<8x128xf32>
    %49 = vector.extract_strided_slice %37 {offsets = [0, 384], sizes = [8, 128], strides = [1, 1]} : vector<8x512xf32> to vector<8x128xf32>
    %50 = math.tanh %49 : vector<8x128xf32>
    %51 = arith.mulf %47, %28 : vector<8x128xf32>
    %52 = arith.mulf %46, %50 : vector<8x128xf32>
    %53 = arith.addf %51, %52 : vector<8x128xf32>
    %54 = math.tanh %53 : vector<8x128xf32>
    %55 = arith.mulf %48, %54 : vector<8x128xf32>
    %c2_i32 = arith.constant 2 : i32
    %56 = arith.index_cast %c2_i32 : i32 to index
    %c0_18 = arith.constant 0 : index
    %c0_19 = arith.constant 0 : index
    %57 = vector.load %arg2[%56, %c0_18, %c0_19] : memref<8x8x512xbf16, #tpu.memory_space<vmem>>, vector<1x8x512xbf16>
    %58 = vector.shape_cast %57 : vector<1x8x512xbf16> to vector<8x512xbf16>
    %59 = arith.extf %58 : vector<8x512xbf16> to vector<8x512xf32>
    %60 = arith.truncf %55 : vector<8x128xf32> to vector<8x128xbf16>
    %cst_20 = arith.constant dense<0.000000e+00> : vector<8x512xf32>
    %61 = tpu.matmul %60, %3, %cst_20 {dimension_numbers = #tpu.dot_dimension_numbers<[1], [0], [0], [1], [0, 0, 1, 1], [], []>} : vector<8x128xbf16>, vector<128x512xbf16>, vector<8x512xf32> -> vector<8x512xf32>
    %62 = arith.addf %59, %61 : vector<8x512xf32>
    %63 = vector.extract_strided_slice %62 {offsets = [0, 0], sizes = [8, 384], strides = [1, 1]} : vector<8x512xf32> to vector<8x384xf32>
    %cst_21 = arith.constant 5.000000e-01 : f32
    %64 = vector.broadcast %cst_21 : f32 to vector<8x384xf32>
    %65 = arith.mulf %64, %63 : vector<8x384xf32>
    %66 = math.tanh %65 : vector<8x384xf32>
    %cst_22 = arith.constant 5.000000e-01 : f32
    %67 = vector.broadcast %cst_22 : f32 to vector<8x384xf32>
    %68 = arith.mulf %67, %66 : vector<8x384xf32>
    %cst_23 = arith.constant 5.000000e-01 : f32
    %69 = vector.broadcast %cst_23 : f32 to vector<8x384xf32>
    %70 = arith.addf %68, %69 : vector<8x384xf32>
    %71 = vector.extract_strided_slice %70 {offsets = [0, 0], sizes = [8, 128], strides = [1, 1]} : vector<8x384xf32> to vector<8x128xf32>
    %72 = vector.extract_strided_slice %70 {offsets = [0, 128], sizes = [8, 128], strides = [1, 1]} : vector<8x384xf32> to vector<8x128xf32>
    %73 = vector.extract_strided_slice %70 {offsets = [0, 256], sizes = [8, 128], strides = [1, 1]} : vector<8x384xf32> to vector<8x128xf32>
    %74 = vector.extract_strided_slice %62 {offsets = [0, 384], sizes = [8, 128], strides = [1, 1]} : vector<8x512xf32> to vector<8x128xf32>
    %75 = math.tanh %74 : vector<8x128xf32>
    %76 = arith.mulf %72, %53 : vector<8x128xf32>
    %77 = arith.mulf %71, %75 : vector<8x128xf32>
    %78 = arith.addf %76, %77 : vector<8x128xf32>
    %79 = math.tanh %78 : vector<8x128xf32>
    %80 = arith.mulf %73, %79 : vector<8x128xf32>
    %c3_i32 = arith.constant 3 : i32
    %81 = arith.index_cast %c3_i32 : i32 to index
    %c0_24 = arith.constant 0 : index
    %c0_25 = arith.constant 0 : index
    %82 = vector.load %arg2[%81, %c0_24, %c0_25] : memref<8x8x512xbf16, #tpu.memory_space<vmem>>, vector<1x8x512xbf16>
    %83 = vector.shape_cast %82 : vector<1x8x512xbf16> to vector<8x512xbf16>
    %84 = arith.extf %83 : vector<8x512xbf16> to vector<8x512xf32>
    %85 = arith.truncf %80 : vector<8x128xf32> to vector<8x128xbf16>
    %cst_26 = arith.constant dense<0.000000e+00> : vector<8x512xf32>
    %86 = tpu.matmul %85, %3, %cst_26 {dimension_numbers = #tpu.dot_dimension_numbers<[1], [0], [0], [1], [0, 0, 1, 1], [], []>} : vector<8x128xbf16>, vector<128x512xbf16>, vector<8x512xf32> -> vector<8x512xf32>
    %87 = arith.addf %84, %86 : vector<8x512xf32>
    %88 = vector.extract_strided_slice %87 {offsets = [0, 0], sizes = [8, 384], strides = [1, 1]} : vector<8x512xf32> to vector<8x384xf32>
    %cst_27 = arith.constant 5.000000e-01 : f32
    %89 = vector.broadcast %cst_27 : f32 to vector<8x384xf32>
    %90 = arith.mulf %89, %88 : vector<8x384xf32>
    %91 = math.tanh %90 : vector<8x384xf32>
    %cst_28 = arith.constant 5.000000e-01 : f32
    %92 = vector.broadcast %cst_28 : f32 to vector<8x384xf32>
    %93 = arith.mulf %92, %91 : vector<8x384xf32>
    %cst_29 = arith.constant 5.000000e-01 : f32
    %94 = vector.broadcast %cst_29 : f32 to vector<8x384xf32>
    %95 = arith.addf %93, %94 : vector<8x384xf32>
    %96 = vector.extract_strided_slice %95 {offsets = [0, 0], sizes = [8, 128], strides = [1, 1]} : vector<8x384xf32> to vector<8x128xf32>
    %97 = vector.extract_strided_slice %95 {offsets = [0, 128], sizes = [8, 128], strides = [1, 1]} : vector<8x384xf32> to vector<8x128xf32>
    %98 = vector.extract_strided_slice %95 {offsets = [0, 256], sizes = [8, 128], strides = [1, 1]} : vector<8x384xf32> to vector<8x128xf32>
    %99 = vector.extract_strided_slice %87 {offsets = [0, 384], sizes = [8, 128], strides = [1, 1]} : vector<8x512xf32> to vector<8x128xf32>
    %100 = math.tanh %99 : vector<8x128xf32>
    %101 = arith.mulf %97, %78 : vector<8x128xf32>
    %102 = arith.mulf %96, %100 : vector<8x128xf32>
    %103 = arith.addf %101, %102 : vector<8x128xf32>
    %104 = math.tanh %103 : vector<8x128xf32>
    %105 = arith.mulf %98, %104 : vector<8x128xf32>
    %c4_i32 = arith.constant 4 : i32
    %106 = arith.index_cast %c4_i32 : i32 to index
    %c0_30 = arith.constant 0 : index
    %c0_31 = arith.constant 0 : index
    %107 = vector.load %arg2[%106, %c0_30, %c0_31] : memref<8x8x512xbf16, #tpu.memory_space<vmem>>, vector<1x8x512xbf16>
    %108 = vector.shape_cast %107 : vector<1x8x512xbf16> to vector<8x512xbf16>
    %109 = arith.extf %108 : vector<8x512xbf16> to vector<8x512xf32>
    %110 = arith.truncf %105 : vector<8x128xf32> to vector<8x128xbf16>
    %cst_32 = arith.constant dense<0.000000e+00> : vector<8x512xf32>
    %111 = tpu.matmul %110, %3, %cst_32 {dimension_numbers = #tpu.dot_dimension_numbers<[1], [0], [0], [1], [0, 0, 1, 1], [], []>} : vector<8x128xbf16>, vector<128x512xbf16>, vector<8x512xf32> -> vector<8x512xf32>
    %112 = arith.addf %109, %111 : vector<8x512xf32>
    %113 = vector.extract_strided_slice %112 {offsets = [0, 0], sizes = [8, 384], strides = [1, 1]} : vector<8x512xf32> to vector<8x384xf32>
    %cst_33 = arith.constant 5.000000e-01 : f32
    %114 = vector.broadcast %cst_33 : f32 to vector<8x384xf32>
    %115 = arith.mulf %114, %113 : vector<8x384xf32>
    %116 = math.tanh %115 : vector<8x384xf32>
    %cst_34 = arith.constant 5.000000e-01 : f32
    %117 = vector.broadcast %cst_34 : f32 to vector<8x384xf32>
    %118 = arith.mulf %117, %116 : vector<8x384xf32>
    %cst_35 = arith.constant 5.000000e-01 : f32
    %119 = vector.broadcast %cst_35 : f32 to vector<8x384xf32>
    %120 = arith.addf %118, %119 : vector<8x384xf32>
    %121 = vector.extract_strided_slice %120 {offsets = [0, 0], sizes = [8, 128], strides = [1, 1]} : vector<8x384xf32> to vector<8x128xf32>
    %122 = vector.extract_strided_slice %120 {offsets = [0, 128], sizes = [8, 128], strides = [1, 1]} : vector<8x384xf32> to vector<8x128xf32>
    %123 = vector.extract_strided_slice %120 {offsets = [0, 256], sizes = [8, 128], strides = [1, 1]} : vector<8x384xf32> to vector<8x128xf32>
    %124 = vector.extract_strided_slice %112 {offsets = [0, 384], sizes = [8, 128], strides = [1, 1]} : vector<8x512xf32> to vector<8x128xf32>
    %125 = math.tanh %124 : vector<8x128xf32>
    %126 = arith.mulf %122, %103 : vector<8x128xf32>
    %127 = arith.mulf %121, %125 : vector<8x128xf32>
    %128 = arith.addf %126, %127 : vector<8x128xf32>
    %129 = math.tanh %128 : vector<8x128xf32>
    %130 = arith.mulf %123, %129 : vector<8x128xf32>
    %c5_i32 = arith.constant 5 : i32
    %131 = arith.index_cast %c5_i32 : i32 to index
    %c0_36 = arith.constant 0 : index
    %c0_37 = arith.constant 0 : index
    %132 = vector.load %arg2[%131, %c0_36, %c0_37] : memref<8x8x512xbf16, #tpu.memory_space<vmem>>, vector<1x8x512xbf16>
    %133 = vector.shape_cast %132 : vector<1x8x512xbf16> to vector<8x512xbf16>
    %134 = arith.extf %133 : vector<8x512xbf16> to vector<8x512xf32>
    %135 = arith.truncf %130 : vector<8x128xf32> to vector<8x128xbf16>
    %cst_38 = arith.constant dense<0.000000e+00> : vector<8x512xf32>
    %136 = tpu.matmul %135, %3, %cst_38 {dimension_numbers = #tpu.dot_dimension_numbers<[1], [0], [0], [1], [0, 0, 1, 1], [], []>} : vector<8x128xbf16>, vector<128x512xbf16>, vector<8x512xf32> -> vector<8x512xf32>
    %137 = arith.addf %134, %136 : vector<8x512xf32>
    %138 = vector.extract_strided_slice %137 {offsets = [0, 0], sizes = [8, 384], strides = [1, 1]} : vector<8x512xf32> to vector<8x384xf32>
    %cst_39 = arith.constant 5.000000e-01 : f32
    %139 = vector.broadcast %cst_39 : f32 to vector<8x384xf32>
    %140 = arith.mulf %139, %138 : vector<8x384xf32>
    %141 = math.tanh %140 : vector<8x384xf32>
    %cst_40 = arith.constant 5.000000e-01 : f32
    %142 = vector.broadcast %cst_40 : f32 to vector<8x384xf32>
    %143 = arith.mulf %142, %141 : vector<8x384xf32>
    %cst_41 = arith.constant 5.000000e-01 : f32
    %144 = vector.broadcast %cst_41 : f32 to vector<8x384xf32>
    %145 = arith.addf %143, %144 : vector<8x384xf32>
    %146 = vector.extract_strided_slice %145 {offsets = [0, 0], sizes = [8, 128], strides = [1, 1]} : vector<8x384xf32> to vector<8x128xf32>
    %147 = vector.extract_strided_slice %145 {offsets = [0, 128], sizes = [8, 128], strides = [1, 1]} : vector<8x384xf32> to vector<8x128xf32>
    %148 = vector.extract_strided_slice %145 {offsets = [0, 256], sizes = [8, 128], strides = [1, 1]} : vector<8x384xf32> to vector<8x128xf32>
    %149 = vector.extract_strided_slice %137 {offsets = [0, 384], sizes = [8, 128], strides = [1, 1]} : vector<8x512xf32> to vector<8x128xf32>
    %150 = math.tanh %149 : vector<8x128xf32>
    %151 = arith.mulf %147, %128 : vector<8x128xf32>
    %152 = arith.mulf %146, %150 : vector<8x128xf32>
    %153 = arith.addf %151, %152 : vector<8x128xf32>
    %154 = math.tanh %153 : vector<8x128xf32>
    %155 = arith.mulf %148, %154 : vector<8x128xf32>
    %c6_i32 = arith.constant 6 : i32
    %156 = arith.index_cast %c6_i32 : i32 to index
    %c0_42 = arith.constant 0 : index
    %c0_43 = arith.constant 0 : index
    %157 = vector.load %arg2[%156, %c0_42, %c0_43] : memref<8x8x512xbf16, #tpu.memory_space<vmem>>, vector<1x8x512xbf16>
    %158 = vector.shape_cast %157 : vector<1x8x512xbf16> to vector<8x512xbf16>
    %159 = arith.extf %158 : vector<8x512xbf16> to vector<8x512xf32>
    %160 = arith.truncf %155 : vector<8x128xf32> to vector<8x128xbf16>
    %cst_44 = arith.constant dense<0.000000e+00> : vector<8x512xf32>
    %161 = tpu.matmul %160, %3, %cst_44 {dimension_numbers = #tpu.dot_dimension_numbers<[1], [0], [0], [1], [0, 0, 1, 1], [], []>} : vector<8x128xbf16>, vector<128x512xbf16>, vector<8x512xf32> -> vector<8x512xf32>
    %162 = arith.addf %159, %161 : vector<8x512xf32>
    %163 = vector.extract_strided_slice %162 {offsets = [0, 0], sizes = [8, 384], strides = [1, 1]} : vector<8x512xf32> to vector<8x384xf32>
    %cst_45 = arith.constant 5.000000e-01 : f32
    %164 = vector.broadcast %cst_45 : f32 to vector<8x384xf32>
    %165 = arith.mulf %164, %163 : vector<8x384xf32>
    %166 = math.tanh %165 : vector<8x384xf32>
    %cst_46 = arith.constant 5.000000e-01 : f32
    %167 = vector.broadcast %cst_46 : f32 to vector<8x384xf32>
    %168 = arith.mulf %167, %166 : vector<8x384xf32>
    %cst_47 = arith.constant 5.000000e-01 : f32
    %169 = vector.broadcast %cst_47 : f32 to vector<8x384xf32>
    %170 = arith.addf %168, %169 : vector<8x384xf32>
    %171 = vector.extract_strided_slice %170 {offsets = [0, 0], sizes = [8, 128], strides = [1, 1]} : vector<8x384xf32> to vector<8x128xf32>
    %172 = vector.extract_strided_slice %170 {offsets = [0, 128], sizes = [8, 128], strides = [1, 1]} : vector<8x384xf32> to vector<8x128xf32>
    %173 = vector.extract_strided_slice %170 {offsets = [0, 256], sizes = [8, 128], strides = [1, 1]} : vector<8x384xf32> to vector<8x128xf32>
    %174 = vector.extract_strided_slice %162 {offsets = [0, 384], sizes = [8, 128], strides = [1, 1]} : vector<8x512xf32> to vector<8x128xf32>
    %175 = math.tanh %174 : vector<8x128xf32>
    %176 = arith.mulf %172, %153 : vector<8x128xf32>
    %177 = arith.mulf %171, %175 : vector<8x128xf32>
    %178 = arith.addf %176, %177 : vector<8x128xf32>
    %179 = math.tanh %178 : vector<8x128xf32>
    %180 = arith.mulf %173, %179 : vector<8x128xf32>
    %c7_i32 = arith.constant 7 : i32
    %181 = arith.index_cast %c7_i32 : i32 to index
    %c0_48 = arith.constant 0 : index
    %c0_49 = arith.constant 0 : index
    %182 = vector.load %arg2[%181, %c0_48, %c0_49] : memref<8x8x512xbf16, #tpu.memory_space<vmem>>, vector<1x8x512xbf16>
    %183 = vector.shape_cast %182 : vector<1x8x512xbf16> to vector<8x512xbf16>
    %184 = arith.extf %183 : vector<8x512xbf16> to vector<8x512xf32>
    %185 = arith.truncf %180 : vector<8x128xf32> to vector<8x128xbf16>
    %cst_50 = arith.constant dense<0.000000e+00> : vector<8x512xf32>
    %186 = tpu.matmul %185, %3, %cst_50 {dimension_numbers = #tpu.dot_dimension_numbers<[1], [0], [0], [1], [0, 0, 1, 1], [], []>} : vector<8x128xbf16>, vector<128x512xbf16>, vector<8x512xf32> -> vector<8x512xf32>
    %187 = arith.addf %184, %186 : vector<8x512xf32>
    %188 = vector.extract_strided_slice %187 {offsets = [0, 0], sizes = [8, 384], strides = [1, 1]} : vector<8x512xf32> to vector<8x384xf32>
    %cst_51 = arith.constant 5.000000e-01 : f32
    %189 = vector.broadcast %cst_51 : f32 to vector<8x384xf32>
    %190 = arith.mulf %189, %188 : vector<8x384xf32>
    %191 = math.tanh %190 : vector<8x384xf32>
    %cst_52 = arith.constant 5.000000e-01 : f32
    %192 = vector.broadcast %cst_52 : f32 to vector<8x384xf32>
    %193 = arith.mulf %192, %191 : vector<8x384xf32>
    %cst_53 = arith.constant 5.000000e-01 : f32
    %194 = vector.broadcast %cst_53 : f32 to vector<8x384xf32>
    %195 = arith.addf %193, %194 : vector<8x384xf32>
    %196 = vector.extract_strided_slice %195 {offsets = [0, 0], sizes = [8, 128], strides = [1, 1]} : vector<8x384xf32> to vector<8x128xf32>
    %197 = vector.extract_strided_slice %195 {offsets = [0, 128], sizes = [8, 128], strides = [1, 1]} : vector<8x384xf32> to vector<8x128xf32>
    %198 = vector.extract_strided_slice %195 {offsets = [0, 256], sizes = [8, 128], strides = [1, 1]} : vector<8x384xf32> to vector<8x128xf32>
    %199 = vector.extract_strided_slice %187 {offsets = [0, 384], sizes = [8, 128], strides = [1, 1]} : vector<8x512xf32> to vector<8x128xf32>
    %200 = math.tanh %199 : vector<8x128xf32>
    %201 = arith.mulf %197, %178 : vector<8x128xf32>
    %202 = arith.mulf %196, %200 : vector<8x128xf32>
    %203 = arith.addf %201, %202 : vector<8x128xf32>
    %204 = math.tanh %203 : vector<8x128xf32>
    %205 = arith.mulf %198, %204 : vector<8x128xf32>
    %c8_i32 = arith.constant 8 : i32
    %c0_54 = arith.constant 0 : index
    %c0_55 = arith.constant 0 : index
    %206 = vector.load %arg5[%c0_54, %c0_55] : memref<8x128xf32, #tpu.memory_space<vmem>>, vector<8x128xf32>
    tpu.vector_store %arg5[%c0_54, %c0_55], %205 {strides = array<i32>} : memref<8x128xf32, #tpu.memory_space<vmem>>, vector<8x128xf32>,
    %c0_56 = arith.constant 0 : index
    %c0_57 = arith.constant 0 : index
    %207 = vector.load %arg6[%c0_56, %c0_57] : memref<8x128xf32, #tpu.memory_space<vmem>>, vector<8x128xf32>
    tpu.vector_store %arg6[%c0_56, %c0_57], %203 {strides = array<i32>} : memref<8x128xf32, #tpu.memory_space<vmem>>, vector<8x128xf32>,
    %c0_i32_58 = arith.constant 0 : i32
    %208 = arith.cmpi eq, %arg1, %c0_i32_58 : i32
    %209 = arith.extui %208 : i1 to i32
    %c0_i32_59 = arith.constant 0 : i32
    %210 = arith.cmpi ne, %209, %c0_i32_59 : i32
    scf.if %210 {
      %c0_60 = arith.constant 0 : index
      %c0_61 = arith.constant 0 : index
      %211 = vector.load %arg5[%c0_60, %c0_61] : memref<8x128xf32, #tpu.memory_space<vmem>>, vector<8x128xf32>
      %c0_62 = arith.constant 0 : index
      %c0_63 = arith.constant 0 : index
      %212 = vector.load %arg4[%c0_62, %c0_63] : memref<8x128xf32, #tpu.memory_space<vmem>>, vector<8x128xf32>
      tpu.vector_store %arg4[%c0_62, %c0_63], %211 {strides = array<i32>} : memref<8x128xf32, #tpu.memory_space<vmem>>, vector<8x128xf32>,
    } else {
    }
    return
  }
  func.func @transform_0(%arg0: i32, %arg1: i32) -> (i32, i32, i32) {
    %c0_i32 = arith.constant 0 : i32
    %c0_i32_0 = arith.constant 0 : i32
    return %arg1, %arg0, %c0_i32 : i32, i32, i32
  }
  func.func @transform_1(%arg0: i32, %arg1: i32) -> (i32, i32) {
    %c0_i32 = arith.constant 0 : i32
    %c0_i32_0 = arith.constant 0 : i32
    %c0_i32_1 = arith.constant 0 : i32
    return %c0_i32, %c0_i32_0 : i32, i32
  }
  func.func @transform_2(%arg0: i32, %arg1: i32) -> (i32, i32) {
    %c0_i32 = arith.constant 0 : i32
    %c0_i32_0 = arith.constant 0 : i32
    return %arg0, %c0_i32 : i32, i32
  }
}

</mosaic_0001>

<llo_original>
// kernel: tpu_custom_call.1
$region0: #{tpu_custom_call.1}
  #allocation0 [shape = 'u32[]', space=smem, size = 0x4, offset = 0x4, fixed_abs, tag = 'smem constant byte address 0x4 - core index']
  #allocation1 [shape = 'u32[72,128]{1,0:T(1,128)}', space=vmem, size = 0x9000, scoped, tag = 'internal scratch']
  #allocation2 [shape = 'f32[8,128]{1,0:T(8,128)}', space=vmem, size = 0x1000, scoped, tag = 'scratch operand']
  #allocation3 [shape = 'f32[8,128]{1,0:T(8,128)}', space=vmem, size = 0x1000, scoped, tag = 'scratch operand']
  %s0 = inlined_call_operand.hbm [shape: bf16[8,8,512], index: 0, kind: input, shape index: {}]
  %s1 = inlined_call_operand.hbm [shape: bf16[128,512], index: 1, kind: input, shape index: {}]
  %s2 = inlined_call_operand.hbm [shape: f32[8,128], index: 2, kind: output, shape index: {}]
  %s3 = sld [smem:[#allocation0]]
  $region34: #{tpu_custom_call.1} parent=0
    _
  %s5 = ssub.s32 1, %s3
  %s6 = scalar_select 0, %s5, %s3
  $region1: #{tpu_custom_call.1} parent=0
    #allocation4 [shape = 'u8[65536]{0}', space=vmem, size = 0x10000, scoped, tag = 'input window, operand 0, single buffered']
    #allocation5 [shape = 's32[1]{0}', space=sflag, size = 0x4, scoped, tag = 'scoped memory for tpu_custom_call.1']
    #allocation6 [shape = 's32[1]{0}', space=sflag, size = 0x4, scoped, tag = 'scoped memory for tpu_custom_call.1']
    #allocation7 [shape = 'u8[131072]{0}', space=vmem, size = 0x20000, scoped, tag = 'input window, operand 1, single buffered']
    #allocation8 [shape = 's32[1]{0}', space=sflag, size = 0x4, scoped, tag = 'scoped memory for tpu_custom_call.1']
    #allocation9 [shape = 'u8[4096]{0}', space=vmem, size = 0x1000, scoped, tag = 'output window, operand 0, single buffered']
    %7 = vsyncpa [#allocation5], 0
    %8 = vsyncpa [#allocation8], 0
    %9 = vsyncpa [#allocation6], 0
    // Predicated region
    $region2: #{tpu_custom_call.1} parent=1 // pred_check
      _
    $region3: #{tpu_custom_call.1} parent=1 // pred_check_branch
      %11 = sbr.rel (0) target = $region5
    $region4: #{tpu_custom_call.1} parent=1 // pred_region
      %13 = vsyncadd [#allocation5], 0
      %s14 = sshll.u32 %s0, 4
      %s15 = int_to_ptr.hbm [resolvable:$true] %s14
      %s16 = sshll.u32 [#allocation4], 4
      %s17 = int_to_ptr.vmem [resolvable:$true] %s16
      %22 = dma.hbm_to_vmem [thread:$0]  %s15, 2048, %s17, [#allocation5], 256, 256, 16
    $region5: #{tpu_custom_call.1} parent=1 // pred_fallthru
      _
    // Predicated region
    $region6: #{tpu_custom_call.1} parent=1 // pred_check
      _
    $region7: #{tpu_custom_call.1} parent=1 // pred_check_branch
      %24 = sbr.rel (0) target = $region9
    $region8: #{tpu_custom_call.1} parent=1 // pred_region
      %26 = vsyncadd [#allocation8], 0
      %s27 = sshll.u32 %s1, 4
      %s28 = int_to_ptr.hbm [resolvable:$true] %s27
      %s29 = sshll.u32 [#allocation7], 4
      %s30 = int_to_ptr.vmem [resolvable:$true] %s29
      %35 = dma.hbm_to_vmem [thread:$0]  %s28, 4096, %s30, [#allocation8], 256, 256, 16
    $region9: #{tpu_custom_call.1} parent=1 // pred_fallthru
      _
    // Predicated region
    $region10: #{tpu_custom_call.1} parent=1 // pred_check
      _
    $region11: #{tpu_custom_call.1} parent=1 // pred_check_branch
      %37 = sbr.rel (0) target = $region13
    $region12: #{tpu_custom_call.1} parent=1 // pred_region
      %39 = dma.done [#allocation5], 2048
    $region13: #{tpu_custom_call.1} parent=1 // pred_fallthru
      _
    // Predicated region
    $region14: #{tpu_custom_call.1} parent=1 // pred_check
      _
    $region15: #{tpu_custom_call.1} parent=1 // pred_check_branch
      %41 = sbr.rel (0) target = $region17
    $region16: #{tpu_custom_call.1} parent=1 // pred_region
      %43 = dma.done [#allocation8], 4096
    $region17: #{tpu_custom_call.1} parent=1 // pred_fallthru
      _
    %p44 = scmp.eq.s32.totalorder 0, 0
    // Predicated region
    $region18: #{tpu_custom_call.1} parent=1 // pred_check
      %p45 = pneg %p44
    $region19: #{tpu_custom_call.1} parent=1 // pred_check_branch
      %47 = sbr.rel (%p45) target = $region21
    $region20: #{tpu_custom_call.1} parent=1 // pred_region
      %48 = vst [vmem:[#allocation2] sm:$0xff] 0.0
      %49 = vst [vmem:[#allocation3] sm:$0xff] 0.0
    $region21: #{tpu_custom_call.1} parent=1 // pred_fallthru
      _
    %v50 = vld [vmem:[#allocation7] sm:$0xff]
    %v51 = vld [vmem:[#allocation7 + $0x8] sm:$0xff]
    %v52 = vld [vmem:[#allocation7 + $0x10] sm:$0xff]
    %v53 = vld [vmem:[#allocation7 + $0x18] sm:$0xff]
    %v54 = vld [vmem:[#allocation7 + $0x20] sm:$0xff]
    %v55 = vld [vmem:[#allocation7 + $0x28] sm:$0xff]
    %v56 = vld [vmem:[#allocation7 + $0x30] sm:$0xff]
    %v57 = vld [vmem:[#allocation7 + $0x38] sm:$0xff]
    %v58 = vld [vmem:[#allocation7 + $0x40] sm:$0xff]
    %v59 = vld [vmem:[#allocation7 + $0x48] sm:$0xff]
    %v60 = vld [vmem:[#allocation7 + $0x50] sm:$0xff]
    %v61 = vld [vmem:[#allocation7 + $0x58] sm:$0xff]
    %v62 = vld [vmem:[#allocation7 + $0x60] sm:$0xff]
    %v63 = vld [vmem:[#allocation7 + $0x68] sm:$0xff]
    %v64 = vld [vmem:[#allocation7 + $0x70] sm:$0xff]
    %v65 = vld [vmem:[#allocation7 + $0x78] sm:$0xff]
    %v66 = vld [vmem:[#allocation7 + $0x80] sm:$0xff]
    %v67 = vld [vmem:[#allocation7 + $0x88] sm:$0xff]
    %v68 = vld [vmem:[#allocation7 + $0x90] sm:$0xff]
    %v69 = vld [vmem:[#allocation7 + $0x98] sm:$0xff]
    %v70 = vld [vmem:[#allocation7 + $0xa0] sm:$0xff]
    %v71 = vld [vmem:[#allocation7 + $0xa8] sm:$0xff]
    %v72 = vld [vmem:[#allocation7 + $0xb0] sm:$0xff]
    %v73 = vld [vmem:[#allocation7 + $0xb8] sm:$0xff]
    %v74 = vld [vmem:[#allocation7 + $0xc0] sm:$0xff]
    %v75 = vld [vmem:[#allocation7 + $0xc8] sm:$0xff]
    %v76 = vld [vmem:[#allocation7 + $0xd0] sm:$0xff]
    %v77 = vld [vmem:[#allocation7 + $0xd8] sm:$0xff]
    %v78 = vld [vmem:[#allocation7 + $0xe0] sm:$0xff]
    %v79 = vld [vmem:[#allocation7 + $0xe8] sm:$0xff]
    %v80 = vld [vmem:[#allocation7 + $0xf0] sm:$0xff]
    %v81 = vld [vmem:[#allocation7 + $0xf8] sm:$0xff]
    %v82 = vld [vmem:[#allocation2] sm:$0xff]
    %v83 = vld [vmem:[#allocation3] sm:$0xff]
    %v84 = vld [vmem:[#allocation4] sm:$0xff]
    %v85 = vld [vmem:[#allocation4 + $0x8] sm:$0xff]
    %v86 = vunpack.c.l.bf16 %v84
    %v87 = vunpack.c.h.bf16 %v84
    %v88 = vunpack.c.l.bf16 %v85
    %v89 = vunpack.c.h.bf16 %v85
    %v90 = vpack.c.bf16 %v82, %v82
    %v123 = vunpack.c.l.b16 %v50
    %v124 = vunpack.c.h.b16 %v50
    %v125 = vunpack.c.l.b16 %v51
    %v126 = vunpack.c.h.b16 %v51
    %v127 = vunpack.c.l.b16 %v52
    %v128 = vunpack.c.h.b16 %v52
    %v129 = vunpack.c.l.b16 %v53
    %v130 = vunpack.c.h.b16 %v53
    %v131 = vunpack.c.l.b16 %v54
    %v132 = vunpack.c.h.b16 %v54
    %v133 = vunpack.c.l.b16 %v55
    %v134 = vunpack.c.h.b16 %v55
    %v135 = vunpack.c.l.b16 %v56
    %v136 = vunpack.c.h.b16 %v56
    %v137 = vunpack.c.l.b16 %v57
    %v138 = vunpack.c.h.b16 %v57
    %v139 = vunpack.c.l.b16 %v58
    %v140 = vunpack.c.h.b16 %v58
    %v141 = vunpack.c.l.b16 %v59
    %v142 = vunpack.c.h.b16 %v59
    %v143 = vunpack.c.l.b16 %v60
    %v144 = vunpack.c.h.b16 %v60
    %v145 = vunpack.c.l.b16 %v61
    %v146 = vunpack.c.h.b16 %v61
    %v147 = vunpack.c.l.b16 %v62
    %v148 = vunpack.c.h.b16 %v62
    %v149 = vunpack.c.l.b16 %v63
    %v150 = vunpack.c.h.b16 %v63
    %v151 = vunpack.c.l.b16 %v64
    %v152 = vunpack.c.h.b16 %v64
    %v153 = vunpack.c.l.b16 %v65
    %v154 = vunpack.c.h.b16 %v65
    %v155 = vunpack.c.l.b16 %v66
    %v156 = vunpack.c.h.b16 %v66
    %v157 = vunpack.c.l.b16 %v67
    %v158 = vunpack.c.h.b16 %v67
    %v159 = vunpack.c.l.b16 %v68
    %v160 = vunpack.c.h.b16 %v68
    %v161 = vunpack.c.l.b16 %v69
    %v162 = vunpack.c.h.b16 %v69
    %v163 = vunpack.c.l.b16 %v70
    %v164 = vunpack.c.h.b16 %v70
    %v165 = vunpack.c.l.b16 %v71
    %v166 = vunpack.c.h.b16 %v71
    %v167 = vunpack.c.l.b16 %v72
    %v168 = vunpack.c.h.b16 %v72
    %v169 = vunpack.c.l.b16 %v73
    %v170 = vunpack.c.h.b16 %v73
    %v171 = vunpack.c.l.b16 %v74
    %v172 = vunpack.c.h.b16 %v74
    %v173 = vunpack.c.l.b16 %v75
    %v174 = vunpack.c.h.b16 %v75
    %v175 = vunpack.c.l.b16 %v76
    %v176 = vunpack.c.h.b16 %v76
    %v177 = vunpack.c.l.b16 %v77
    %v178 = vunpack.c.h.b16 %v77
    %v179 = vunpack.c.l.b16 %v78
    %v180 = vunpack.c.h.b16 %v78
    %v181 = vunpack.c.l.b16 %v79
    %v182 = vunpack.c.h.b16 %v79
    %v183 = vunpack.c.l.b16 %v80
    %v184 = vunpack.c.h.b16 %v80
    %v185 = vunpack.c.l.b16 %v81
    %v186 = vunpack.c.h.b16 %v81
    %v187 = vpack.c.b16 %v127, %v123
    %v188 = vpack.c.b16 %v128, %v124
    %v189 = vpack.c.b16 %v129, %v125
    %v190 = vpack.c.b16 %v130, %v126
    %v191 = vpack.c.b16 %v135, %v131
    %v192 = vpack.c.b16 %v136, %v132
    %v193 = vpack.c.b16 %v137, %v133
    %v194 = vpack.c.b16 %v138, %v134
    %v195 = vpack.c.b16 %v143, %v139
    %v196 = vpack.c.b16 %v144, %v140
    %v197 = vpack.c.b16 %v145, %v141
    %v198 = vpack.c.b16 %v146, %v142
    %v199 = vpack.c.b16 %v151, %v147
    %v200 = vpack.c.b16 %v152, %v148
    %v201 = vpack.c.b16 %v153, %v149
    %v202 = vpack.c.b16 %v154, %v150
    %v203 = vpack.c.b16 %v159, %v155
    %v204 = vpack.c.b16 %v160, %v156
    %v205 = vpack.c.b16 %v161, %v157
    %v206 = vpack.c.b16 %v162, %v158
    %v207 = vpack.c.b16 %v167, %v163
    %v208 = vpack.c.b16 %v168, %v164
    %v209 = vpack.c.b16 %v169, %v165
    %v210 = vpack.c.b16 %v170, %v166
    %v211 = vpack.c.b16 %v175, %v171
    %v212 = vpack.c.b16 %v176, %v172
    %v213 = vpack.c.b16 %v177, %v173
    %v214 = vpack.c.b16 %v178, %v174
    %v215 = vpack.c.b16 %v183, %v179
    %v216 = vpack.c.b16 %v184, %v180
    %v217 = vpack.c.b16 %v185, %v181
    %v218 = vpack.c.b16 %v186, %v182
    %251 = vmatpush.bf16.msra.mxu0 %v215
    %252 = vmatpush.bf16.msra.mxu0 %v211
    %253 = vmatpush.bf16.msra.mxu0 %v207
    %254 = vmatpush.bf16.msra.mxu0 %v203
    %255 = vmatpush.bf16.msra.mxu0 %v199
    %256 = vmatpush.bf16.msra.mxu0 %v195
    %257 = vmatpush.bf16.msra.mxu0 %v191
    %258 = vmatpush.bf16.msra.mxu0 %v187
    %259 = vmatmul.bf16.gmra.mxu0 %v90
    %v260 = vpop.f32.mrf.mxu0
    %v261 = vadd.f32 0.0, %v260
    %v262 = vpop.f32.mrf.mxu0
    %263 = vdwg.mxu0
    %264 = vmatpush.bf16.msra.mxu0 %v216
    %265 = vmatpush.bf16.msra.mxu0 %v212
    %266 = vmatpush.bf16.msra.mxu0 %v208
    %267 = vmatpush.bf16.msra.mxu0 %v204
    %268 = vmatpush.bf16.msra.mxu0 %v200
    %269 = vmatpush.bf16.msra.mxu0 %v196
    %270 = vmatpush.bf16.msra.mxu0 %v192
    %271 = vmatpush.bf16.msra.mxu0 %v188
    %272 = vmatmul.bf16.gmra.mxu0 %v90
    %v273 = vpop.f32.mrf.mxu0
    %v274 = vadd.f32 0.0, %v273
    %v275 = vpop.f32.mrf.mxu0
    %276 = vdwg.mxu0
    %277 = vmatpush.bf16.msra.mxu0 %v217
    %278 = vmatpush.bf16.msra.mxu0 %v213
    %279 = vmatpush.bf16.msra.mxu0 %v209
    %280 = vmatpush.bf16.msra.mxu0 %v205
    %281 = vmatpush.bf16.msra.mxu0 %v201
    %282 = vmatpush.bf16.msra.mxu0 %v197
    %283 = vmatpush.bf16.msra.mxu0 %v193
    %284 = vmatpush.bf16.msra.mxu0 %v189
    %285 = vmatmul.bf16.gmra.mxu0 %v90
    %v286 = vpop.f32.mrf.mxu0
    %v287 = vadd.f32 0.0, %v286
    %v288 = vpop.f32.mrf.mxu0
    %289 = vdwg.mxu0
    %290 = vmatpush.bf16.msra.mxu0 %v218
    %291 = vmatpush.bf16.msra.mxu0 %v214
    %292 = vmatpush.bf16.msra.mxu0 %v210
    %293 = vmatpush.bf16.msra.mxu0 %v206
    %294 = vmatpush.bf16.msra.mxu0 %v202
    %295 = vmatpush.bf16.msra.mxu0 %v198
    %296 = vmatpush.bf16.msra.mxu0 %v194
    %297 = vmatpush.bf16.msra.mxu0 %v190
    %298 = vmatmul.bf16.gmra.mxu0 %v90
    %v299 = vpop.f32.mrf.mxu0
    %v300 = vadd.f32 0.0, %v299
    %v301 = vpop.f32.mrf.mxu0
    %302 = vdwg.mxu0
    %v303 = vadd.f32 %v86, %v261
    %v304 = vadd.f32 %v87, %v274
    %v305 = vadd.f32 %v88, %v287
    %v306 = vadd.f32 %v89, %v300
    %v307 = vmul.f32 %v303, 0.5
    %v308 = vmul.f32 %v304, 0.5
    %v309 = vmul.f32 %v305, 0.5
    %v310 = vtanh.pop %v307
    %v311 = vtanh.pop %v308
    %v312 = vtanh.pop %v309
    %v313 = vmul.f32 %v310, 0.5
    %v314 = vmul.f32 %v311, 0.5
    %v315 = vmul.f32 %v312, 0.5
    %v316 = vadd.f32 %v313, 0.5
    %v317 = vadd.f32 %v314, 0.5
    %v318 = vadd.f32 %v315, 0.5
    %v319 = vtanh.pop %v306
    %v320 = vmul.f32 %v317, %v83
    %v321 = vmul.f32 %v316, %v319
    %v322 = vadd.f32 %v320, %v321
    %v323 = vtanh.pop %v322
    %v324 = vmul.f32 %v318, %v323
    %s325 = scalar_lea.vmem [#allocation4], 16
    %v326 = vld [vmem:[%s325] sm:$0xff]
    %v327 = vld [vmem:[%s325 + $0x8] sm:$0xff]
    %v328 = vunpack.c.l.bf16 %v326
    %v329 = vunpack.c.h.bf16 %v326
    %v330 = vunpack.c.l.bf16 %v327
    %v331 = vunpack.c.h.bf16 %v327
    %v332 = vpack.c.bf16 %v324, %v324
    %333 = vmatpush.bf16.msra.mxu0 %v215
    %334 = vmatpush.bf16.msra.mxu0 %v211
    %335 = vmatpush.bf16.msra.mxu0 %v207
    %336 = vmatpush.bf16.msra.mxu0 %v203
    %337 = vmatpush.bf16.msra.mxu0 %v199
    %338 = vmatpush.bf16.msra.mxu0 %v195
    %339 = vmatpush.bf16.msra.mxu0 %v191
    %340 = vmatpush.bf16.msra.mxu0 %v187
    %341 = vmatmul.bf16.gmra.mxu0 %v332
    %v342 = vpop.f32.mrf.mxu0
    %v343 = vadd.f32 0.0, %v342
    %v344 = vpop.f32.mrf.mxu0
    %345 = vdwg.mxu0
    %346 = vmatpush.bf16.msra.mxu0 %v216
    %347 = vmatpush.bf16.msra.mxu0 %v212
    %348 = vmatpush.bf16.msra.mxu0 %v208
    %349 = vmatpush.bf16.msra.mxu0 %v204
    %350 = vmatpush.bf16.msra.mxu0 %v200
    %351 = vmatpush.bf16.msra.mxu0 %v196
    %352 = vmatpush.bf16.msra.mxu0 %v192
    %353 = vmatpush.bf16.msra.mxu0 %v188
    %354 = vmatmul.bf16.gmra.mxu0 %v332
    %v355 = vpop.f32.mrf.mxu0
    %v356 = vadd.f32 0.0, %v355
    %v357 = vpop.f32.mrf.mxu0
    %358 = vdwg.mxu0
    %359 = vmatpush.bf16.msra.mxu0 %v217
    %360 = vmatpush.bf16.msra.mxu0 %v213
    %361 = vmatpush.bf16.msra.mxu0 %v209
    %362 = vmatpush.bf16.msra.mxu0 %v205
    %363 = vmatpush.bf16.msra.mxu0 %v201
    %364 = vmatpush.bf16.msra.mxu0 %v197
    %365 = vmatpush.bf16.msra.mxu0 %v193
    %366 = vmatpush.bf16.msra.mxu0 %v189
    %367 = vmatmul.bf16.gmra.mxu0 %v332
    %v368 = vpop.f32.mrf.mxu0
    %v369 = vadd.f32 0.0, %v368
    %v370 = vpop.f32.mrf.mxu0
    %371 = vdwg.mxu0
    %372 = vmatpush.bf16.msra.mxu0 %v218
    %373 = vmatpush.bf16.msra.mxu0 %v214
    %374 = vmatpush.bf16.msra.mxu0 %v210
    %375 = vmatpush.bf16.msra.mxu0 %v206
    %376 = vmatpush.bf16.msra.mxu0 %v202
    %377 = vmatpush.bf16.msra.mxu0 %v198
    %378 = vmatpush.bf16.msra.mxu0 %v194
    %379 = vmatpush.bf16.msra.mxu0 %v190
    %380 = vmatmul.bf16.gmra.mxu0 %v332
    %v381 = vpop.f32.mrf.mxu0
    %v382 = vadd.f32 0.0, %v381
    %v383 = vpop.f32.mrf.mxu0
    %384 = vdwg.mxu0
    %v385 = vadd.f32 %v328, %v343
    %v386 = vadd.f32 %v329, %v356
    %v387 = vadd.f32 %v330, %v369
    %v388 = vadd.f32 %v331, %v382
    %v389 = vmul.f32 %v385, 0.5
    %v390 = vmul.f32 %v386, 0.5
    %v391 = vmul.f32 %v387, 0.5
    %v392 = vtanh.pop %v389
    %v393 = vtanh.pop %v390
    %v394 = vtanh.pop %v391
    %v395 = vmul.f32 %v392, 0.5
    %v396 = vmul.f32 %v393, 0.5
    %v397 = vmul.f32 %v394, 0.5
    %v398 = vadd.f32 %v395, 0.5
    %v399 = vadd.f32 %v396, 0.5
    %v400 = vadd.f32 %v397, 0.5
    %v401 = vtanh.pop %v388
    %v402 = vmul.f32 %v399, %v322
    %v403 = vmul.f32 %v398, %v401
    %v404 = vadd.f32 %v402, %v403
    %v405 = vtanh.pop %v404
    %v406 = vmul.f32 %v400, %v405
    %s407 = scalar_lea.vmem [#allocation4], 32
    %v408 = vld [vmem:[%s407] sm:$0xff]
    %v409 = vld [vmem:[%s407 + $0x8] sm:$0xff]
    %v410 = vunpack.c.l.bf16 %v408
    %v411 = vunpack.c.h.bf16 %v408
    %v412 = vunpack.c.l.bf16 %v409
    %v413 = vunpack.c.h.bf16 %v409
    %v414 = vpack.c.bf16 %v406, %v406
    %415 = vmatpush.bf16.msra.mxu0 %v215
    %416 = vmatpush.bf16.msra.mxu0 %v211
    %417 = vmatpush.bf16.msra.mxu0 %v207
    %418 = vmatpush.bf16.msra.mxu0 %v203
    %419 = vmatpush.bf16.msra.mxu0 %v199
    %420 = vmatpush.bf16.msra.mxu0 %v195
    %421 = vmatpush.bf16.msra.mxu0 %v191
    %422 = vmatpush.bf16.msra.mxu0 %v187
    %423 = vmatmul.bf16.gmra.mxu0 %v414
    %v424 = vpop.f32.mrf.mxu0
    %v425 = vadd.f32 0.0, %v424
    %v426 = vpop.f32.mrf.mxu0
    %427 = vdwg.mxu0
    %428 = vmatpush.bf16.msra.mxu0 %v216
    %429 = vmatpush.bf16.msra.mxu0 %v212
    %430 = vmatpush.bf16.msra.mxu0 %v208
    %431 = vmatpush.bf16.msra.mxu0 %v204
    %432 = vmatpush.bf16.msra.mxu0 %v200
    %433 = vmatpush.bf16.msra.mxu0 %v196
    %434 = vmatpush.bf16.msra.mxu0 %v192
    %435 = vmatpush.bf16.msra.mxu0 %v188
    %436 = vmatmul.bf16.gmra.mxu0 %v414
    %v437 = vpop.f32.mrf.mxu0
    %v438 = vadd.f32 0.0, %v437
    %v439 = vpop.f32.mrf.mxu0
    %440 = vdwg.mxu0
    %441 = vmatpush.bf16.msra.mxu0 %v217
    %442 = vmatpush.bf16.msra.mxu0 %v213
    %443 = vmatpush.bf16.msra.mxu0 %v209
    %444 = vmatpush.bf16.msra.mxu0 %v205
    %445 = vmatpush.bf16.msra.mxu0 %v201
    %446 = vmatpush.bf16.msra.mxu0 %v197
    %447 = vmatpush.bf16.msra.mxu0 %v193
    %448 = vmatpush.bf16.msra.mxu0 %v189
    %449 = vmatmul.bf16.gmra.mxu0 %v414
    %v450 = vpop.f32.mrf.mxu0
    %v451 = vadd.f32 0.0, %v450
    %v452 = vpop.f32.mrf.mxu0
    %453 = vdwg.mxu0
    %454 = vmatpush.bf16.msra.mxu0 %v218
    %455 = vmatpush.bf16.msra.mxu0 %v214
    %456 = vmatpush.bf16.msra.mxu0 %v210
    %457 = vmatpush.bf16.msra.mxu0 %v206
    %458 = vmatpush.bf16.msra.mxu0 %v202
    %459 = vmatpush.bf16.msra.mxu0 %v198
    %460 = vmatpush.bf16.msra.mxu0 %v194
    %461 = vmatpush.bf16.msra.mxu0 %v190
    %462 = vmatmul.bf16.gmra.mxu0 %v414
    %v463 = vpop.f32.mrf.mxu0
    %v464 = vadd.f32 0.0, %v463
    %v465 = vpop.f32.mrf.mxu0
    %466 = vdwg.mxu0
    %v467 = vadd.f32 %v410, %v425
    %v468 = vadd.f32 %v411, %v438
    %v469 = vadd.f32 %v412, %v451
    %v470 = vadd.f32 %v413, %v464
    %v471 = vmul.f32 %v467, 0.5
    %v472 = vmul.f32 %v468, 0.5
    %v473 = vmul.f32 %v469, 0.5
    %v474 = vtanh.pop %v471
    %v475 = vtanh.pop %v472
    %v476 = vtanh.pop %v473
    %v477 = vmul.f32 %v474, 0.5
    %v478 = vmul.f32 %v475, 0.5
    %v479 = vmul.f32 %v476, 0.5
    %v480 = vadd.f32 %v477, 0.5
    %v481 = vadd.f32 %v478, 0.5
    %v482 = vadd.f32 %v479, 0.5
    %v483 = vtanh.pop %v470
    %v484 = vmul.f32 %v481, %v404
    %v485 = vmul.f32 %v480, %v483
    %v486 = vadd.f32 %v484, %v485
    %v487 = vtanh.pop %v486
    %v488 = vmul.f32 %v482, %v487
    %s489 = scalar_lea.vmem [#allocation4], 48
    %v490 = vld [vmem:[%s489] sm:$0xff]
    %v491 = vld [vmem:[%s489 + $0x8] sm:$0xff]
    %v492 = vunpack.c.l.bf16 %v490
    %v493 = vunpack.c.h.bf16 %v490
    %v494 = vunpack.c.l.bf16 %v491
    %v495 = vunpack.c.h.bf16 %v491
    %v496 = vpack.c.bf16 %v488, %v488
    %497 = vmatpush.bf16.msra.mxu0 %v215
    %498 = vmatpush.bf16.msra.mxu0 %v211
    %499 = vmatpush.bf16.msra.mxu0 %v207
    %500 = vmatpush.bf16.msra.mxu0 %v203
    %501 = vmatpush.bf16.msra.mxu0 %v199
    %502 = vmatpush.bf16.msra.mxu0 %v195
    %503 = vmatpush.bf16.msra.mxu0 %v191
    %504 = vmatpush.bf16.msra.mxu0 %v187
    %505 = vmatmul.bf16.gmra.mxu0 %v496
    %v506 = vpop.f32.mrf.mxu0
    %v507 = vadd.f32 0.0, %v506
    %v508 = vpop.f32.mrf.mxu0
    %509 = vdwg.mxu0
    %510 = vmatpush.bf16.msra.mxu0 %v216
    %511 = vmatpush.bf16.msra.mxu0 %v212
    %512 = vmatpush.bf16.msra.mxu0 %v208
    %513 = vmatpush.bf16.msra.mxu0 %v204
    %514 = vmatpush.bf16.msra.mxu0 %v200
    %515 = vmatpush.bf16.msra.mxu0 %v196
    %516 = vmatpush.bf16.msra.mxu0 %v192
    %517 = vmatpush.bf16.msra.mxu0 %v188
    %518 = vmatmul.bf16.gmra.mxu0 %v496
    %v519 = vpop.f32.mrf.mxu0
    %v520 = vadd.f32 0.0, %v519
    %v521 = vpop.f32.mrf.mxu0
    %522 = vdwg.mxu0
    %523 = vmatpush.bf16.msra.mxu0 %v217
    %524 = vmatpush.bf16.msra.mxu0 %v213
    %525 = vmatpush.bf16.msra.mxu0 %v209
    %526 = vmatpush.bf16.msra.mxu0 %v205
    %527 = vmatpush.bf16.msra.mxu0 %v201
    %528 = vmatpush.bf16.msra.mxu0 %v197
    %529 = vmatpush.bf16.msra.mxu0 %v193
    %530 = vmatpush.bf16.msra.mxu0 %v189
    %531 = vmatmul.bf16.gmra.mxu0 %v496
    %v532 = vpop.f32.mrf.mxu0
    %v533 = vadd.f32 0.0, %v532
    %v534 = vpop.f32.mrf.mxu0
    %535 = vdwg.mxu0
    %536 = vmatpush.bf16.msra.mxu0 %v218
    %537 = vmatpush.bf16.msra.mxu0 %v214
    %538 = vmatpush.bf16.msra.mxu0 %v210
    %539 = vmatpush.bf16.msra.mxu0 %v206
    %540 = vmatpush.bf16.msra.mxu0 %v202
    %541 = vmatpush.bf16.msra.mxu0 %v198
    %542 = vmatpush.bf16.msra.mxu0 %v194
    %543 = vmatpush.bf16.msra.mxu0 %v190
    %544 = vmatmul.bf16.gmra.mxu0 %v496
    %v545 = vpop.f32.mrf.mxu0
    %v546 = vadd.f32 0.0, %v545
    %v547 = vpop.f32.mrf.mxu0
    %548 = vdwg.mxu0
    %v549 = vadd.f32 %v492, %v507
    %v550 = vadd.f32 %v493, %v520
    %v551 = vadd.f32 %v494, %v533
    %v552 = vadd.f32 %v495, %v546
    %v553 = vmul.f32 %v549, 0.5
    %v554 = vmul.f32 %v550, 0.5
    %v555 = vmul.f32 %v551, 0.5
    %v556 = vtanh.pop %v553
    %v557 = vtanh.pop %v554
    %v558 = vtanh.pop %v555
    %v559 = vmul.f32 %v556, 0.5
    %v560 = vmul.f32 %v557, 0.5
    %v561 = vmul.f32 %v558, 0.5
    %v562 = vadd.f32 %v559, 0.5
    %v563 = vadd.f32 %v560, 0.5
    %v564 = vadd.f32 %v561, 0.5
    %v565 = vtanh.pop %v552
    %v566 = vmul.f32 %v563, %v486
    %v567 = vmul.f32 %v562, %v565
    %v568 = vadd.f32 %v566, %v567
    %v569 = vtanh.pop %v568
    %v570 = vmul.f32 %v564, %v569
    %s571 = scalar_lea.vmem [#allocation4], 64
    %v572 = vld [vmem:[%s571] sm:$0xff]
    %v573 = vld [vmem:[%s571 + $0x8] sm:$0xff]
    %v574 = vunpack.c.l.bf16 %v572
    %v575 = vunpack.c.h.bf16 %v572
    %v576 = vunpack.c.l.bf16 %v573
    %v577 = vunpack.c.h.bf16 %v573
    %v578 = vpack.c.bf16 %v570, %v570
    %579 = vmatpush.bf16.msra.mxu0 %v215
    %580 = vmatpush.bf16.msra.mxu0 %v211
    %581 = vmatpush.bf16.msra.mxu0 %v207
    %582 = vmatpush.bf16.msra.mxu0 %v203
    %583 = vmatpush.bf16.msra.mxu0 %v199
    %584 = vmatpush.bf16.msra.mxu0 %v195
    %585 = vmatpush.bf16.msra.mxu0 %v191
    %586 = vmatpush.bf16.msra.mxu0 %v187
    %587 = vmatmul.bf16.gmra.mxu0 %v578
    %v588 = vpop.f32.mrf.mxu0
    %v589 = vadd.f32 0.0, %v588
    %v590 = vpop.f32.mrf.mxu0
    %591 = vdwg.mxu0
    %592 = vmatpush.bf16.msra.mxu0 %v216
    %593 = vmatpush.bf16.msra.mxu0 %v212
    %594 = vmatpush.bf16.msra.mxu0 %v208
    %595 = vmatpush.bf16.msra.mxu0 %v204
    %596 = vmatpush.bf16.msra.mxu0 %v200
    %597 = vmatpush.bf16.msra.mxu0 %v196
    %598 = vmatpush.bf16.msra.mxu0 %v192
    %599 = vmatpush.bf16.msra.mxu0 %v188
    %600 = vmatmul.bf16.gmra.mxu0 %v578
    %v601 = vpop.f32.mrf.mxu0
    %v602 = vadd.f32 0.0, %v601
    %v603 = vpop.f32.mrf.mxu0
    %604 = vdwg.mxu0
    %605 = vmatpush.bf16.msra.mxu0 %v217
    %606 = vmatpush.bf16.msra.mxu0 %v213
    %607 = vmatpush.bf16.msra.mxu0 %v209
    %608 = vmatpush.bf16.msra.mxu0 %v205
    %609 = vmatpush.bf16.msra.mxu0 %v201
    %610 = vmatpush.bf16.msra.mxu0 %v197
    %611 = vmatpush.bf16.msra.mxu0 %v193
    %612 = vmatpush.bf16.msra.mxu0 %v189
    %613 = vmatmul.bf16.gmra.mxu0 %v578
    %v614 = vpop.f32.mrf.mxu0
    %v615 = vadd.f32 0.0, %v614
    %v616 = vpop.f32.mrf.mxu0
    %617 = vdwg.mxu0
    %618 = vmatpush.bf16.msra.mxu0 %v218
    %619 = vmatpush.bf16.msra.mxu0 %v214
    %620 = vmatpush.bf16.msra.mxu0 %v210
    %621 = vmatpush.bf16.msra.mxu0 %v206
    %622 = vmatpush.bf16.msra.mxu0 %v202
    %623 = vmatpush.bf16.msra.mxu0 %v198
    %624 = vmatpush.bf16.msra.mxu0 %v194
    %625 = vmatpush.bf16.msra.mxu0 %v190
    %626 = vmatmul.bf16.gmra.mxu0 %v578
    %v627 = vpop.f32.mrf.mxu0
    %v628 = vadd.f32 0.0, %v627
    %v629 = vpop.f32.mrf.mxu0
    %630 = vdwg.mxu0
    %v631 = vadd.f32 %v574, %v589
    %v632 = vadd.f32 %v575, %v602
    %v633 = vadd.f32 %v576, %v615
    %v634 = vadd.f32 %v577, %v628
    %v635 = vmul.f32 %v631, 0.5
    %v636 = vmul.f32 %v632, 0.5
    %v637 = vmul.f32 %v633, 0.5
    %v638 = vtanh.pop %v635
    %v639 = vtanh.pop %v636
    %v640 = vtanh.pop %v637
    %v641 = vmul.f32 %v638, 0.5
    %v642 = vmul.f32 %v639, 0.5
    %v643 = vmul.f32 %v640, 0.5
    %v644 = vadd.f32 %v641, 0.5
    %v645 = vadd.f32 %v642, 0.5
    %v646 = vadd.f32 %v643, 0.5
    %v647 = vtanh.pop %v634
    %v648 = vmul.f32 %v645, %v568
    %v649 = vmul.f32 %v644, %v647
    %v650 = vadd.f32 %v648, %v649
    %v651 = vtanh.pop %v650
    %v652 = vmul.f32 %v646, %v651
    %s653 = scalar_lea.vmem [#allocation4], 80
    %v654 = vld [vmem:[%s653] sm:$0xff]
    %v655 = vld [vmem:[%s653 + $0x8] sm:$0xff]
    %v656 = vunpack.c.l.bf16 %v654
    %v657 = vunpack.c.h.bf16 %v654
    %v658 = vunpack.c.l.bf16 %v655
    %v659 = vunpack.c.h.bf16 %v655
    %v660 = vpack.c.bf16 %v652, %v652
    %661 = vmatpush.bf16.msra.mxu0 %v215
    %662 = vmatpush.bf16.msra.mxu0 %v211
    %663 = vmatpush.bf16.msra.mxu0 %v207
    %664 = vmatpush.bf16.msra.mxu0 %v203
    %665 = vmatpush.bf16.msra.mxu0 %v199
    %666 = vmatpush.bf16.msra.mxu0 %v195
    %667 = vmatpush.bf16.msra.mxu0 %v191
    %668 = vmatpush.bf16.msra.mxu0 %v187
    %669 = vmatmul.bf16.gmra.mxu0 %v660
    %v670 = vpop.f32.mrf.mxu0
    %v671 = vadd.f32 0.0, %v670
    %v672 = vpop.f32.mrf.mxu0
    %673 = vdwg.mxu0
    %674 = vmatpush.bf16.msra.mxu0 %v216
    %675 = vmatpush.bf16.msra.mxu0 %v212
    %676 = vmatpush.bf16.msra.mxu0 %v208
    %677 = vmatpush.bf16.msra.mxu0 %v204
    %678 = vmatpush.bf16.msra.mxu0 %v200
    %679 = vmatpush.bf16.msra.mxu0 %v196
    %680 = vmatpush.bf16.msra.mxu0 %v192
    %681 = vmatpush.bf16.msra.mxu0 %v188
    %682 = vmatmul.bf16.gmra.mxu0 %v660
    %v683 = vpop.f32.mrf.mxu0
    %v684 = vadd.f32 0.0, %v683
    %v685 = vpop.f32.mrf.mxu0
    %686 = vdwg.mxu0
    %687 = vmatpush.bf16.msra.mxu0 %v217
    %688 = vmatpush.bf16.msra.mxu0 %v213
    %689 = vmatpush.bf16.msra.mxu0 %v209
    %690 = vmatpush.bf16.msra.mxu0 %v205
    %691 = vmatpush.bf16.msra.mxu0 %v201
    %692 = vmatpush.bf16.msra.mxu0 %v197
    %693 = vmatpush.bf16.msra.mxu0 %v193
    %694 = vmatpush.bf16.msra.mxu0 %v189
    %695 = vmatmul.bf16.gmra.mxu0 %v660
    %v696 = vpop.f32.mrf.mxu0
    %v697 = vadd.f32 0.0, %v696
    %v698 = vpop.f32.mrf.mxu0
    %699 = vdwg.mxu0
    %700 = vmatpush.bf16.msra.mxu0 %v218
    %701 = vmatpush.bf16.msra.mxu0 %v214
    %702 = vmatpush.bf16.msra.mxu0 %v210
    %703 = vmatpush.bf16.msra.mxu0 %v206
    %704 = vmatpush.bf16.msra.mxu0 %v202
    %705 = vmatpush.bf16.msra.mxu0 %v198
    %706 = vmatpush.bf16.msra.mxu0 %v194
    %707 = vmatpush.bf16.msra.mxu0 %v190
    %708 = vmatmul.bf16.gmra.mxu0 %v660
    %v709 = vpop.f32.mrf.mxu0
    %v710 = vadd.f32 0.0, %v709
    %v711 = vpop.f32.mrf.mxu0
    %712 = vdwg.mxu0
    %v713 = vadd.f32 %v656, %v671
    %v714 = vadd.f32 %v657, %v684
    %v715 = vadd.f32 %v658, %v697
    %v716 = vadd.f32 %v659, %v710
    %v717 = vmul.f32 %v713, 0.5
    %v718 = vmul.f32 %v714, 0.5
    %v719 = vmul.f32 %v715, 0.5
    %v720 = vtanh.pop %v717
    %v721 = vtanh.pop %v718
    %v722 = vtanh.pop %v719
    %v723 = vmul.f32 %v720, 0.5
    %v724 = vmul.f32 %v721, 0.5
    %v725 = vmul.f32 %v722, 0.5
    %v726 = vadd.f32 %v723, 0.5
    %v727 = vadd.f32 %v724, 0.5
    %v728 = vadd.f32 %v725, 0.5
    %v729 = vtanh.pop %v716
    %v730 = vmul.f32 %v727, %v650
    %v731 = vmul.f32 %v726, %v729
    %v732 = vadd.f32 %v730, %v731
    %v733 = vtanh.pop %v732
    %v734 = vmul.f32 %v728, %v733
    %s735 = scalar_lea.vmem [#allocation4], 96
    %v736 = vld [vmem:[%s735] sm:$0xff]
    %v737 = vld [vmem:[%s735 + $0x8] sm:$0xff]
    %v738 = vunpack.c.l.bf16 %v736
    %v739 = vunpack.c.h.bf16 %v736
    %v740 = vunpack.c.l.bf16 %v737
    %v741 = vunpack.c.h.bf16 %v737
    %v742 = vpack.c.bf16 %v734, %v734
    %743 = vmatpush.bf16.msra.mxu0 %v215
    %744 = vmatpush.bf16.msra.mxu0 %v211
    %745 = vmatpush.bf16.msra.mxu0 %v207
    %746 = vmatpush.bf16.msra.mxu0 %v203
    %747 = vmatpush.bf16.msra.mxu0 %v199
    %748 = vmatpush.bf16.msra.mxu0 %v195
    %749 = vmatpush.bf16.msra.mxu0 %v191
    %750 = vmatpush.bf16.msra.mxu0 %v187
    %751 = vmatmul.bf16.gmra.mxu0 %v742
    %v752 = vpop.f32.mrf.mxu0
    %v753 = vadd.f32 0.0, %v752
    %v754 = vpop.f32.mrf.mxu0
    %755 = vdwg.mxu0
    %756 = vmatpush.bf16.msra.mxu0 %v216
    %757 = vmatpush.bf16.msra.mxu0 %v212
    %758 = vmatpush.bf16.msra.mxu0 %v208
    %759 = vmatpush.bf16.msra.mxu0 %v204
    %760 = vmatpush.bf16.msra.mxu0 %v200
    %761 = vmatpush.bf16.msra.mxu0 %v196
    %762 = vmatpush.bf16.msra.mxu0 %v192
    %763 = vmatpush.bf16.msra.mxu0 %v188
    %764 = vmatmul.bf16.gmra.mxu0 %v742
    %v765 = vpop.f32.mrf.mxu0
    %v766 = vadd.f32 0.0, %v765
    %v767 = vpop.f32.mrf.mxu0
    %768 = vdwg.mxu0
    %769 = vmatpush.bf16.msra.mxu0 %v217
    %770 = vmatpush.bf16.msra.mxu0 %v213
    %771 = vmatpush.bf16.msra.mxu0 %v209
    %772 = vmatpush.bf16.msra.mxu0 %v205
    %773 = vmatpush.bf16.msra.mxu0 %v201
    %774 = vmatpush.bf16.msra.mxu0 %v197
    %775 = vmatpush.bf16.msra.mxu0 %v193
    %776 = vmatpush.bf16.msra.mxu0 %v189
    %777 = vmatmul.bf16.gmra.mxu0 %v742
    %v778 = vpop.f32.mrf.mxu0
    %v779 = vadd.f32 0.0, %v778
    %v780 = vpop.f32.mrf.mxu0
    %781 = vdwg.mxu0
    %782 = vmatpush.bf16.msra.mxu0 %v218
    %783 = vmatpush.bf16.msra.mxu0 %v214
    %784 = vmatpush.bf16.msra.mxu0 %v210
    %785 = vmatpush.bf16.msra.mxu0 %v206
    %786 = vmatpush.bf16.msra.mxu0 %v202
    %787 = vmatpush.bf16.msra.mxu0 %v198
    %788 = vmatpush.bf16.msra.mxu0 %v194
    %789 = vmatpush.bf16.msra.mxu0 %v190
    %790 = vmatmul.bf16.gmra.mxu0 %v742
    %v791 = vpop.f32.mrf.mxu0
    %v792 = vadd.f32 0.0, %v791
    %v793 = vpop.f32.mrf.mxu0
    %794 = vdwg.mxu0
    %v795 = vadd.f32 %v738, %v753
    %v796 = vadd.f32 %v739, %v766
    %v797 = vadd.f32 %v740, %v779
    %v798 = vadd.f32 %v741, %v792
    %v799 = vmul.f32 %v795, 0.5
    %v800 = vmul.f32 %v796, 0.5
    %v801 = vmul.f32 %v797, 0.5
    %v802 = vtanh.pop %v799
    %v803 = vtanh.pop %v800
    %v804 = vtanh.pop %v801
    %v805 = vmul.f32 %v802, 0.5
    %v806 = vmul.f32 %v803, 0.5
    %v807 = vmul.f32 %v804, 0.5
    %v808 = vadd.f32 %v805, 0.5
    %v809 = vadd.f32 %v806, 0.5
    %v810 = vadd.f32 %v807, 0.5
    %v811 = vtanh.pop %v798
    %v812 = vmul.f32 %v809, %v732
    %v813 = vmul.f32 %v808, %v811
    %v814 = vadd.f32 %v812, %v813
    %v815 = vtanh.pop %v814
    %v816 = vmul.f32 %v810, %v815
    %s817 = scalar_lea.vmem [#allocation4], 112
    %v818 = vld [vmem:[%s817] sm:$0xff]
    %v819 = vld [vmem:[%s817 + $0x8] sm:$0xff]
    %v820 = vunpack.c.l.bf16 %v818
    %v821 = vunpack.c.h.bf16 %v818
    %v822 = vunpack.c.l.bf16 %v819
    %v823 = vunpack.c.h.bf16 %v819
    %v824 = vpack.c.bf16 %v816, %v816
    %825 = vmatpush.bf16.msra.mxu0 %v215
    %826 = vmatpush.bf16.msra.mxu0 %v211
    %827 = vmatpush.bf16.msra.mxu0 %v207
    %828 = vmatpush.bf16.msra.mxu0 %v203
    %829 = vmatpush.bf16.msra.mxu0 %v199
    %830 = vmatpush.bf16.msra.mxu0 %v195
    %831 = vmatpush.bf16.msra.mxu0 %v191
    %832 = vmatpush.bf16.msra.mxu0 %v187
    %833 = vmatmul.bf16.gmra.mxu0 %v824
    %v834 = vpop.f32.mrf.mxu0
    %v835 = vadd.f32 0.0, %v834
    %v836 = vpop.f32.mrf.mxu0
    %837 = vdwg.mxu0
    %838 = vmatpush.bf16.msra.mxu0 %v216
    %839 = vmatpush.bf16.msra.mxu0 %v212
    %840 = vmatpush.bf16.msra.mxu0 %v208
    %841 = vmatpush.bf16.msra.mxu0 %v204
    %842 = vmatpush.bf16.msra.mxu0 %v200
    %843 = vmatpush.bf16.msra.mxu0 %v196
    %844 = vmatpush.bf16.msra.mxu0 %v192
    %845 = vmatpush.bf16.msra.mxu0 %v188
    %846 = vmatmul.bf16.gmra.mxu0 %v824
    %v847 = vpop.f32.mrf.mxu0
    %v848 = vadd.f32 0.0, %v847
    %v849 = vpop.f32.mrf.mxu0
    %850 = vdwg.mxu0
    %851 = vmatpush.bf16.msra.mxu0 %v217
    %852 = vmatpush.bf16.msra.mxu0 %v213
    %853 = vmatpush.bf16.msra.mxu0 %v209
    %854 = vmatpush.bf16.msra.mxu0 %v205
    %855 = vmatpush.bf16.msra.mxu0 %v201
    %856 = vmatpush.bf16.msra.mxu0 %v197
    %857 = vmatpush.bf16.msra.mxu0 %v193
    %858 = vmatpush.bf16.msra.mxu0 %v189
    %859 = vmatmul.bf16.gmra.mxu0 %v824
    %v860 = vpop.f32.mrf.mxu0
    %v861 = vadd.f32 0.0, %v860
    %v862 = vpop.f32.mrf.mxu0
    %863 = vdwg.mxu0
    %864 = vmatpush.bf16.msra.mxu0 %v218
    %865 = vmatpush.bf16.msra.mxu0 %v214
    %866 = vmatpush.bf16.msra.mxu0 %v210
    %867 = vmatpush.bf16.msra.mxu0 %v206
    %868 = vmatpush.bf16.msra.mxu0 %v202
    %869 = vmatpush.bf16.msra.mxu0 %v198
    %870 = vmatpush.bf16.msra.mxu0 %v194
    %871 = vmatpush.bf16.msra.mxu0 %v190
    %872 = vmatmul.bf16.gmra.mxu0 %v824
    %v873 = vpop.f32.mrf.mxu0
    %v874 = vadd.f32 0.0, %v873
    %v875 = vpop.f32.mrf.mxu0
    %876 = vdwg.mxu0
    %v877 = vadd.f32 %v820, %v835
    %v878 = vadd.f32 %v821, %v848
    %v879 = vadd.f32 %v822, %v861
    %v880 = vadd.f32 %v823, %v874
    %v881 = vmul.f32 %v877, 0.5
    %v882 = vmul.f32 %v878, 0.5
    %v883 = vmul.f32 %v879, 0.5
    %v884 = vtanh.pop %v881
    %v885 = vtanh.pop %v882
    %v886 = vtanh.pop %v883
    %v887 = vmul.f32 %v884, 0.5
    %v888 = vmul.f32 %v885, 0.5
    %v889 = vmul.f32 %v886, 0.5
    %v890 = vadd.f32 %v887, 0.5
    %v891 = vadd.f32 %v888, 0.5
    %v892 = vadd.f32 %v889, 0.5
    %v893 = vtanh.pop %v880
    %v894 = vmul.f32 %v891, %v814
    %v895 = vmul.f32 %v890, %v893
    %v896 = vadd.f32 %v894, %v895
    %v897 = vtanh.pop %v896
    %v898 = vmul.f32 %v892, %v897
    %899 = vst [vmem:[#allocation2] sm:$0xff] %v898
    %900 = vst [vmem:[#allocation3] sm:$0xff] %v896
    // Predicated region
    $region22: #{tpu_custom_call.1} parent=1 // pred_check
      %p901 = pneg %p44
    $region23: #{tpu_custom_call.1} parent=1 // pred_check_branch
      %903 = sbr.rel (%p901) target = $region25
    $region24: #{tpu_custom_call.1} parent=1 // pred_region
      %v904 = vld [vmem:[#allocation2] sm:$0xff]
      %905 = vst [vmem:[#allocation9] sm:$0xff] %v904
    $region25: #{tpu_custom_call.1} parent=1 // pred_fallthru
      _
    // Predicated region
    $region26: #{tpu_custom_call.1} parent=1 // pred_check
      _
    $region27: #{tpu_custom_call.1} parent=1 // pred_check_branch
      %907 = sbr.rel (0) target = $region29
    $region28: #{tpu_custom_call.1} parent=1 // pred_region
      %909 = vsyncadd [#allocation6], 0
      %s911 = sshll.u32 [#allocation9], 4
      %s912 = int_to_ptr.vmem [resolvable:$true] %s911
      %s913 = sshll.u32 %s2, 4
      %s914 = int_to_ptr.hbm [resolvable:$true] %s913
      %916 = dma.vmem_to_hbm [thread:$0]  %s912, 128, %s914, [#allocation6]
    $region29: #{tpu_custom_call.1} parent=1 // pred_fallthru
      _
    // Predicated region
    $region30: #{tpu_custom_call.1} parent=1 // pred_check
      _
    $region31: #{tpu_custom_call.1} parent=1 // pred_check_branch
      %918 = sbr.rel (0) target = $region33
    $region32: #{tpu_custom_call.1} parent=1 // pred_region
      %920 = dma.done [#allocation6], 128
    $region33: #{tpu_custom_call.1} parent=1 // pred_fallthru
      _
    %921 = vsyncpa [#allocation5], 1
    %922 = vsyncpa [#allocation8], 1
    %923 = vsyncpa [#allocation6], 1

</llo_original>
